<compile_context>
chip_gen: v5e
topology: v5e:2x2
jax: 0.10.0
libtpu: 0.0.40
codegen_flags: <defaults>
</compile_context>

<pallas_src>
import functools

import jax
import jax.numpy as jnp
from jax.experimental import pallas as pl
from jax.experimental.pallas import tpu as pltpu


# --------------------------------------------------------------------------- #
# Kernel
# --------------------------------------------------------------------------- #
def _focal_ce_kernel(targets_ref, logits_ref, out_ref, *,
                     alpha, gamma, n_total, tile_n, reduction):
    pid = pl.program_id(0)

    x = logits_ref[...].astype(jnp.float32)              # (tile_n, C) f32 compute
    tgt = targets_ref[...]                                # (tile_n, 1) int32

    # In-kernel "one-hot": compare the class iota (lanes) with the target index.
    classes = jax.lax.broadcasted_iota(jnp.int32, x.shape, 1)
    mask = classes == tgt                                 # (tile_n, C) bool

    # Numerically stable log-sum-exp over the class (lane) axis.
    m = jnp.max(x, axis=-1, keepdims=True)                # (tile_n, 1)
    ez = jnp.exp(x - m)
    lse = jnp.log(jnp.sum(ez, axis=-1, keepdims=True)) + m

    # Cross entropy per sample: lse - logit[target].
    target_logit = jnp.sum(jnp.where(mask, x, 0.0), axis=-1, keepdims=True)
    ce = lse - target_logit                               # (tile_n, 1)

    # p_t = softmax(x)[target] = exp(logit_t - lse) = exp(-ce) (no 2nd reduce).
    p_t = jnp.exp(target_logit - lse)                     # (tile_n, 1)

    one_minus = 1.0 - p_t
    g = float(gamma)
    if g == int(g) and 0.0 <= g <= 8.0:
        gi = int(g)
        w = jnp.ones_like(one_minus) if gi == 0 else one_minus
        for _ in range(max(gi - 1, 0)):
            w = w * one_minus                             # gamma=2 -> one VPU mul
    else:
        # Generic real gamma: explicit exp/log (EUP) instead of lax.pow.
        w = jnp.exp(g * jnp.log(jnp.maximum(one_minus, 1e-30)))

    focal = (float(alpha) * w) * ce                       # (tile_n, 1)

    if reduction == "none":
        # Per-sample losses; the partial edge block's out-of-bounds rows are
        # clipped by the Pallas writeback, so no masking is needed here.
        out_ref[...] = focal.astype(out_ref.dtype)
    else:
        # Mask rows beyond the true N (garbage/NaN from the unpadded edge
        # block), reduce to a per-tile partial sum and scatter it into row 0
        # of this tile's private (8, 1) output block. The grid axis stays
        # 'parallel' (megacore on v7x); the final sum happens on the host.
        row = pid * tile_n + jax.lax.broadcasted_iota(jnp.int32, focal.shape, 0)
        tile_sum = jnp.sum(jnp.where(row < n_total, focal, 0.0))
        rows8 = jax.lax.broadcasted_iota(jnp.int32, (8, 1), 0)
        out_ref[...] = jnp.where(rows8 == 0, tile_sum, 0.0)


# --------------------------------------------------------------------------- #
# Tile sizing / VMEM budgeting
# --------------------------------------------------------------------------- #
def _vmem_capacity_bytes():
    """Physical VMEM per TensorCore; conservative 64 MiB (v7x) fallback."""
    try:
        cap = int(getattr(pltpu.get_tpu_info(), "vmem_capacity_bytes", 0))
        if cap > 0:
            return cap
    except Exception:
        pass
    return 64 * 1024 * 1024


def _row_vmem_bytes(c_pad, itemsize):
    # Per batch-row VMEM: double-buffered logits tile (native dtype, lane-
    # padded width) + ~3 rows of f32 compute temporaries + double-buffered
    # lane-padded (tile_n, 1) int32 targets tile.
    return 2 * c_pad * itemsize + 3 * c_pad * 4 + 2 * 128 * 4


# --------------------------------------------------------------------------- #
# Wrapper
# --------------------------------------------------------------------------- #
def focal_cross_entropy_loss(logits, targets, alpha=1.0, gamma=2.0,
                             reduction="mean", tile_n=None):
    """JAX/Pallas equivalent of FocalCrossEntropyLoss.forward.

    logits:  (N, C) float (f32 or bf16; DMA'd in native dtype)
    targets: (N,)   int class indices
    """
    if reduction not in ("mean", "sum", "none"):
        raise ValueError(f"unknown reduction: {reduction!r}")

    N, C = logits.shape
    itemsize = logits.dtype.itemsize
    c_pad = max(((C + 127) // 128) * 128, 128)            # lane-padded class width
    row_bytes = _row_vmem_bytes(c_pad, itemsize)
    cap = _vmem_capacity_bytes()
    mult = 16 if itemsize < 4 else 8                       # sublane packing (bf16: 16)

    if tile_n is None:
        # ~8 MiB per logits buffer on 128 MiB-VMEM parts (v5e/v6e), ~5 MiB on
        # 64 MiB parts (v7x); also keep the full working set under ~cap/2.
        per_buf = (8 << 20) if cap >= (128 << 20) else (5 << 20)
        t = min(per_buf // max(1, c_pad * itemsize),
                (cap // 2) // max(1, row_bytes))
        tile_n = max(mult, (t // mult) * mult)
    else:
        tile_n = max(mult, (int(tile_n) // mult) * mult)
    tile_n = min(tile_n, N)
    # TODO(synk): for very large C (c_pad*itemsize approaching the per-buffer
    # budget) add a class-axis grid dimension with a streaming (online
    # max+sum) LSE instead of holding a full (tile_n, C) row block.

    num_tiles = pl.cdiv(N, tile_n)

    # Targets ride along as a tiny (N, 1) int32 array (no one-hot, no padding).
    targets_2d = targets.astype(jnp.int32).reshape(N, 1)

    kernel = functools.partial(
        _focal_ce_kernel, alpha=float(alpha), gamma=float(gamma),
        n_total=N, tile_n=tile_n, reduction=reduction)

    in_specs = [
        pl.BlockSpec((tile_n, 1), lambda i: (i, 0)),       # targets
        pl.BlockSpec((tile_n, C), lambda i: (i, 0)),       # logits (native dtype)
    ]

    if reduction == "none":
        out_shape = jax.ShapeDtypeStruct((N, 1), logits.dtype)
        out_specs = pl.BlockSpec((tile_n, 1), lambda i: (i, 0))
    else:
        # One private (8, 1) f32 partial-sum block per grid step (row 0 holds
        # the tile's partial sum, rows 1..7 are zero) -> fully parallel grid.
        out_shape = jax.ShapeDtypeStruct((num_tiles * 8, 1), jnp.float32)
        out_specs = pl.BlockSpec((8, 1), lambda i: (i, 0))

    vmem_limit = int(min(cap - (4 << 20),
                         max(32 << 20, row_bytes * tile_n + (8 << 20))))

    out = pl.pallas_call(
        kernel,
        out_shape=out_shape,
        grid_spec=pltpu.PrefetchScalarGridSpec(
            num_scalar_prefetch=0,
            grid=(num_tiles,),
            in_specs=in_specs,
            out_specs=out_specs,
        ),
        compiler_params=pltpu.CompilerParams(
            dimension_semantics=("parallel",),
            vmem_limit_bytes=vmem_limit,
        ),
    )(targets_2d, logits)

    if reduction == "none":
        return out[:, 0]                                   # (N,), logits dtype
    total = jnp.sum(out)                                   # tree-sum of partials
    if reduction == "mean":
        total = total / float(N)
    return total.astype(logits.dtype)


# --------------------------------------------------------------------------- #
# Pure-JAX reference mirroring the PyTorch module
# --------------------------------------------------------------------------- #
def _reference(logits, targets, alpha=1.0, gamma=2.0, reduction="mean"):
    lse = jax.scipy.special.logsumexp(logits, axis=1)
    target_logit = jnp.take_along_axis(logits, targets[:, None], axis=1)[:, 0]
    ce = lse - target_logit
    probs = jax.nn.softmax(logits, axis=1)
    p_t = jnp.take_along_axis(probs, targets[:, None], axis=1)[:, 0]
    focal = alpha * (1.0 - p_t) ** gamma * ce
    if reduction == "mean":
        return jnp.mean(focal)
    if reduction == "sum":
        return jnp.sum(focal)
    return focal


if __name__ == "__main__":
    key = jax.random.PRNGKey(0)
    k1, k2 = jax.random.split(key)

    # Small shapes; N deliberately NOT a multiple of the tile so the unpadded
    # partial edge block (grid = 3: 8 + 8 + 4 valid rows) is exercised.
    N, C = 20, 32
    logits = jax.random.normal(k1, (N, C), dtype=jnp.float32)
    targets = jax.random.randint(k2, (N,), 0, C, dtype=jnp.int32)

    for reduction in ("mean", "sum", "none"):
        out = focal_cross_entropy_loss(logits, targets, alpha=1.0, gamma=2.0,
                                       reduction=reduction, tile_n=8)
        out = jax.block_until_ready(out)
        ref = _reference(logits, targets, alpha=1.0, gamma=2.0, reduction=reduction)
        assert jnp.allclose(out, ref, rtol=1e-5, atol=1e-5), (reduction, out, ref)

    # Auto tile sizing (single full block) + non-integer gamma (exp/log path).
    out = focal_cross_entropy_loss(logits, targets, alpha=0.25, gamma=1.5,
                                   reduction="mean")
    out = jax.block_until_ready(out)
    ref = _reference(logits, targets, alpha=0.25, gamma=1.5, reduction="mean")
    assert jnp.allclose(out, ref, rtol=1e-5, atol=1e-5), (out, ref)

    # bf16 inputs (native-dtype DMA, f32 on-core math), 16-row tiles + edge.
    logits_bf16 = logits.astype(jnp.bfloat16)
    out = focal_cross_entropy_loss(logits_bf16, targets, alpha=1.0, gamma=2.0,
                                   reduction="mean", tile_n=16)
    out = jax.block_until_ready(out)
    ref = _reference(logits_bf16.astype(jnp.float32), targets, 1.0, 2.0, "mean")
    assert jnp.allclose(out.astype(jnp.float32), ref, rtol=2e-2, atol=2e-2), (out, ref)

    print("KERNEL_OK")
</pallas_src>

<mosaic_0001>
module attributes {stable_mosaic.version = 11 : i64} {
  func.func @_focal_ce_kernel(%arg0: i32, %arg1: memref<8x1xi32, #tpu.memory_space<vmem>>, %arg2: memref<8x32xf32, #tpu.memory_space<vmem>>, %arg3: memref<8x1xf32, #tpu.memory_space<vmem>>) attributes {dimension_semantics = [#tpu.dimension_semantics<parallel>], iteration_bounds = array<i64: 3>, scalar_prefetch = 0 : i64, scratch_operands = 0 : i64, tpu.core_type = #tpu.core_type<tc>, window_params = [{transform_indices = @transform_0, window_bounds = array<i64: 8, 1>}, {transform_indices = @transform_1, window_bounds = array<i64: 8, 32>}, {transform_indices = @transform_2, window_bounds = array<i64: 8, 1>}]} {
    %c0 = arith.constant 0 : index
    %c0_0 = arith.constant 0 : index
    %0 = vector.load %arg2[%c0, %c0_0] : memref<8x32xf32, #tpu.memory_space<vmem>>, vector<8x32xf32>
    %c0_1 = arith.constant 0 : index
    %c0_2 = arith.constant 0 : index
    %1 = vector.load %arg1[%c0_1, %c0_2] : memref<8x1xi32, #tpu.memory_space<vmem>>, vector<8x1xi32>
    %2 = tpu.iota {dimensions = array<i32: 1>} : vector<8x32xi32>
    %3 = vector.broadcast %1 : vector<8x1xi32> to vector<8x32xi32>
    %4 = arith.cmpi eq, %2, %3 : vector<8x32xi32>
    %cst = arith.constant dense<0xFF800000> : vector<8xf32>
    %5 = vector.multi_reduction <maximumf>, %0, %cst [1] : vector<8x32xf32> to vector<8xf32>
    %6 = vector.shape_cast %5 : vector<8xf32> to vector<8x1xf32>
    %7 = vector.broadcast %6 : vector<8x1xf32> to vector<8x32xf32>
    %8 = arith.subf %0, %7 : vector<8x32xf32>
    %9 = math.exp %8 : vector<8x32xf32>
    %cst_3 = arith.constant dense<0.000000e+00> : vector<8xf32>
    %10 = vector.multi_reduction <add>, %9, %cst_3 [1] : vector<8x32xf32> to vector<8xf32>
    %11 = vector.shape_cast %10 : vector<8xf32> to vector<8x1xf32>
    %12 = math.log %11 : vector<8x1xf32>
    %13 = arith.addf %12, %6 : vector<8x1xf32>
    %cst_4 = arith.constant 0.000000e+00 : f32
    %14 = vector.broadcast %cst_4 : f32 to vector<8x32xf32>
    %15 = arith.select %4, %0, %14 : vector<8x32xi1>, vector<8x32xf32>
    %cst_5 = arith.constant dense<0.000000e+00> : vector<8xf32>
    %16 = vector.multi_reduction <add>, %15, %cst_5 [1] : vector<8x32xf32> to vector<8xf32>
    %17 = vector.shape_cast %16 : vector<8xf32> to vector<8x1xf32>
    %18 = arith.subf %13, %17 : vector<8x1xf32>
    %19 = arith.subf %17, %13 : vector<8x1xf32>
    %20 = math.exp %19 : vector<8x1xf32>
    %cst_6 = arith.constant 1.000000e+00 : f32
    %21 = vector.broadcast %cst_6 : f32 to vector<8x1xf32>
    %22 = arith.subf %21, %20 : vector<8x1xf32>
    %23 = arith.mulf %22, %22 : vector<8x1xf32>
    %cst_7 = arith.constant 1.000000e+00 : f32
    %24 = vector.broadcast %cst_7 : f32 to vector<8x1xf32>
    %25 = arith.mulf %24, %23 : vector<8x1xf32>
    %26 = arith.mulf %25, %18 : vector<8x1xf32>
    %c8_i32 = arith.constant 8 : i32
    %27 = arith.muli %arg0, %c8_i32 : i32
    %28 = tpu.iota {dimensions = array<i32: 0>} : vector<8x1xi32>
    %29 = vector.broadcast %27 : i32 to vector<8x1xi32>
    %30 = arith.addi %29, %28 : vector<8x1xi32>
    %c20_i32 = arith.constant 20 : i32
    %31 = vector.broadcast %c20_i32 : i32 to vector<8x1xi32>
    %32 = arith.cmpi slt, %30, %31 : vector<8x1xi32>
    %cst_8 = arith.constant 0.000000e+00 : f32
    %33 = vector.broadcast %cst_8 : f32 to vector<8x1xf32>
    %34 = arith.select %32, %26, %33 : vector<8x1xi1>, vector<8x1xf32>
    %35 = vector.shape_cast %34 : vector<8x1xf32> to vector<1x8x1xf32>
    %cst_9 = arith.constant dense<0.000000e+00> : vector<1xf32>
    %36 = vector.multi_reduction <add>, %35, %cst_9 [1, 2] : vector<1x8x1xf32> to vector<1xf32>
    %37 = vector.shape_cast %36 : vector<1xf32> to vector<1x1x1xf32>
    %38 = vector.extract %37[0, 0, 0] : f32 from vector<1x1x1xf32>
    %39 = tpu.iota {dimensions = array<i32: 0>} : vector<8x1xi32>
    %c0_i32 = arith.constant 0 : i32
    %40 = vector.broadcast %c0_i32 : i32 to vector<8x1xi32>
    %41 = arith.cmpi eq, %39, %40 : vector<8x1xi32>
    %cst_10 = arith.constant 0.000000e+00 : f32
    %42 = vector.broadcast %38 : f32 to vector<8x1xf32>
    %43 = vector.broadcast %cst_10 : f32 to vector<8x1xf32>
    %44 = arith.select %41, %42, %43 : vector<8x1xi1>, vector<8x1xf32>
    %c0_11 = arith.constant 0 : index
    %c0_12 = arith.constant 0 : index
    %45 = vector.load %arg3[%c0_11, %c0_12] : memref<8x1xf32, #tpu.memory_space<vmem>>, vector<8x1xf32>
    tpu.vector_store %arg3[%c0_11, %c0_12], %44 {strides = array<i32>} : memref<8x1xf32, #tpu.memory_space<vmem>>, vector<8x1xf32>,
    return
  }
  func.func @transform_0(%arg0: i32) -> (i32, i32) {
    %c0_i32 = arith.constant 0 : i32
    %c0_i32_0 = arith.constant 0 : i32
    return %arg0, %c0_i32 : i32, i32
  }
  func.func @transform_1(%arg0: i32) -> (i32, i32) {
    %c0_i32 = arith.constant 0 : i32
    %c0_i32_0 = arith.constant 0 : i32
    return %arg0, %c0_i32 : i32, i32
  }
  func.func @transform_2(%arg0: i32) -> (i32, i32) {
    %c0_i32 = arith.constant 0 : i32
    %c0_i32_0 = arith.constant 0 : i32
    return %arg0, %c0_i32 : i32, i32
  }
}

</mosaic_0001>

<llo_original>
// kernel: tpu_custom_call.1
$region0: #{tpu_custom_call.1}
  #allocation0 [shape = 'u32[]', space=smem, size = 0x4, offset = 0x4, fixed_abs, tag = 'smem constant byte address 0x4 - core index']
  #allocation1 [shape = 'u32[72,128]{1,0:T(1,128)}', space=vmem, size = 0x9000, scoped, tag = 'internal scratch']
  %s0 = inlined_call_operand.vmem [shape: s32[20,1], index: 0, kind: input, shape index: {}]
  %s1 = inlined_call_operand.vmem [shape: f32[20,32], index: 1, kind: input, shape index: {}]
  %s2 = inlined_call_operand.vmem [shape: f32[24,1], index: 2, kind: output, shape index: {}]
  %s3 = sld [smem:[#allocation0]]
  $region41: #{tpu_custom_call.1} parent=0
    _
  %s5 = ssub.s32 1, %s3
  %s6 = scalar_select 0, %s5, %s3
  loop: start=0, step=1, limit=5
  $region2: #{tpu_custom_call.1} parent=0 // loop_pre_header
    _
  $region3: #{tpu_custom_call.1} parent=0 // loop_header
    %s8 = sphi 0, %s12
    %p9 = scmp.ge.s32.totalorder %s8, 5
    %s18 = sphi 0, %s20
    %s21 = sphi 0, %s18
    %s22 = sphi 0, %s21
    %s38 = sphi 0, %s22
    %s44 = sphi 0, %s46
    %s47 = sphi 0, %s44
    %s48 = sphi 0, %s47
    %s64 = sphi 0, %s48
    %s70 = sphi 0, %s72
    %s73 = sphi 0, %s70
    %s74 = sphi 0, %s73
    %s90 = sphi 0, %s74
  $region4: #{tpu_custom_call.1} parent=0 // loop_header_branch
    %11 = sbr.rel (%p9) target = $region8
  $region5: #{tpu_custom_call.1} parent=0 // loop_body
    %s13 = ssub.s32 %s8, 1
    %s14 = ssub.s32 %s8, 2
    %s15 = sadd.s32 %s8, 1
    %s16 = ssub.s32 %s8, %s15
    %p17 = scmp.eq.s32.totalorder %s16, 0
    %s19 = sadd.s32 %s18, 1
    %s20 = scalar_select %p17, %s18, %s19
    %p23 = pneg %p17
    %p24 = scmp.eq.s32.totalorder %s8, 2
    %p25 = por %p23, %p24
    %p26 = scmp.ne.s32.totalorder %s18, %s21
    %p27 = scmp.eq.s32.totalorder %s8, 0
    %p28 = por %p26, %p27
    %p29 = scmp.ne.s32.totalorder %s18, %s21
    %p30 = scmp.eq.s32.totalorder %s13, 2
    %p31 = por %p29, %p30
    %p32 = scmp.ne.s32.totalorder %s21, %s22
    %p33 = scmp.eq.s32.totalorder %s13, 0
    %p34 = por %p32, %p33
    %p35 = scmp.ne.s32.totalorder %s21, %s22
    %p36 = scmp.eq.s32.totalorder %s14, 2
    %p37 = por %p35, %p36
    %p39 = scmp.ne.s32.totalorder %s22, %s38
    %p40 = scmp.eq.s32.totalorder %s14, 0
    %p41 = por %p39, %p40
    %s42 = ssub.s32 %s8, %s15
    %p43 = scmp.eq.s32.totalorder %s42, 0
    %s45 = sadd.s32 %s44, 1
    %s46 = scalar_select %p43, %s44, %s45
    %p49 = pneg %p43
    %p50 = scmp.eq.s32.totalorder %s8, 2
    %p51 = por %p49, %p50
    %p52 = scmp.ne.s32.totalorder %s44, %s47
    %p53 = scmp.eq.s32.totalorder %s8, 0
    %p54 = por %p52, %p53
    %p55 = scmp.ne.s32.totalorder %s44, %s47
    %p56 = scmp.eq.s32.totalorder %s13, 2
    %p57 = por %p55, %p56
    %p58 = scmp.ne.s32.totalorder %s47, %s48
    %p59 = scmp.eq.s32.totalorder %s13, 0
    %p60 = por %p58, %p59
    %p61 = scmp.ne.s32.totalorder %s47, %s48
    %p62 = scmp.eq.s32.totalorder %s14, 2
    %p63 = por %p61, %p62
    %p65 = scmp.ne.s32.totalorder %s48, %s64
    %p66 = scmp.eq.s32.totalorder %s14, 0
    %p67 = por %p65, %p66
    %s68 = ssub.s32 %s8, %s15
    %p69 = scmp.eq.s32.totalorder %s68, 0
    %s71 = sadd.s32 %s70, 1
    %s72 = scalar_select %p69, %s70, %s71
    %p75 = pneg %p69
    %p76 = scmp.eq.s32.totalorder %s8, 2
    %p77 = por %p75, %p76
    %p78 = scmp.ne.s32.totalorder %s70, %s73
    %p79 = scmp.eq.s32.totalorder %s8, 0
    %p80 = por %p78, %p79
    %p81 = scmp.ne.s32.totalorder %s70, %s73
    %p82 = scmp.eq.s32.totalorder %s13, 2
    %p83 = por %p81, %p82
    %p84 = scmp.ne.s32.totalorder %s73, %s74
    %p85 = scmp.eq.s32.totalorder %s13, 0
    %p86 = por %p84, %p85
    %p87 = scmp.ne.s32.totalorder %s73, %s74
    %p88 = scmp.eq.s32.totalorder %s14, 2
    %p89 = por %p87, %p88
    %p91 = scmp.ne.s32.totalorder %s74, %s90
    %p92 = scmp.eq.s32.totalorder %s14, 0
    %p93 = por %p91, %p92
    %p94 = scmp.le.s32.totalorder 1, %s8
    %p95 = scmp.lt.s32.totalorder %s8, 4
    %p96 = pnand %p94, %p95
    %p97 = pneg %p96
    // Predicated region
    $region9: #{tpu_custom_call.1} parent=5 // pred_check
      _
    $region10: #{tpu_custom_call.1} parent=5 // pred_check_branch
      %99 = sbr.rel (%p96) target = $region12
    $region11: #{tpu_custom_call.1} parent=5 // pred_region
      %s100 = ssub.s32 %s8, 1
    $region12: #{tpu_custom_call.1} parent=5 // pred_fallthru
      _
    %p101 = scmp.lt.s32.totalorder %s8, 3
    // Predicated region
    $region13: #{tpu_custom_call.1} parent=5 // pred_check
      %p102 = pneg %p101
    $region14: #{tpu_custom_call.1} parent=5 // pred_check_branch
      %104 = sbr.rel (%p102) target = $region16
    $region15: #{tpu_custom_call.1} parent=5 // pred_region
      // Predicated region
      $region17: #{tpu_custom_call.1} parent=15 // pred_check
        %p105 = pneg %p28
      $region18: #{tpu_custom_call.1} parent=15 // pred_check_branch
        %107 = sbr.rel (%p105) target = $region20
      $region19: #{tpu_custom_call.1} parent=15 // pred_region
        %p108 = scmp.lt.s32.totalorder %s8, 2
        %s109 = scalar_select %p108, %s8, 2
        %s110 = smul.addr %s109, 8
        %s111 = scalar_lea.vmem %s0, %s110
      $region20: #{tpu_custom_call.1} parent=15 // pred_fallthru
        _
      // Predicated region
      $region21: #{tpu_custom_call.1} parent=15 // pred_check
        %p112 = pneg %p54
      $region22: #{tpu_custom_call.1} parent=15 // pred_check_branch
        %114 = sbr.rel (%p112) target = $region24
      $region23: #{tpu_custom_call.1} parent=15 // pred_region
        %p115 = scmp.lt.s32.totalorder %s8, 2
        %s116 = scalar_select %p115, %s8, 2
        %s117 = smul.addr %s116, 8
        %s118 = scalar_lea.vmem %s1, %s117
      $region24: #{tpu_custom_call.1} parent=15 // pred_fallthru
        _
    $region16: #{tpu_custom_call.1} parent=5 // pred_fallthru
      _
    %p119 = scmp.le.s32.totalorder 1, %s8
    %p120 = scmp.lt.s32.totalorder %s8, 4
    %p121 = pnand %p119, %p120
    %p122 = pneg %p121
    // Predicated region
    $region25: #{tpu_custom_call.1} parent=5 // pred_check
      _
    $region26: #{tpu_custom_call.1} parent=5 // pred_check_branch
      %124 = sbr.rel (%p121) target = $region28
    $region27: #{tpu_custom_call.1} parent=5 // pred_region
      %s125 = ssub.s32 %s8, 1
      %p126 = scmp.lt.s32.totalorder %s13, 2
      %s127 = scalar_select %p126, %s13, 2
      %s128 = smul.addr %s127, 8
      %s129 = scalar_lea.vmem %s0, %s128
      %p130 = pneg %p34
      %p131 = pneg %p31
      %p132 = scmp.lt.s32.totalorder %s13, 2
      %s133 = scalar_select %p132, %s13, 2
      %s134 = smul.addr %s133, 8
      %s135 = scalar_lea.vmem %s1, %s134
      %p136 = pneg %p60
      %p137 = pneg %p57
      %p138 = pneg %p86
      %p139 = pneg %p83
      %p140 = scmp.lt.s32.totalorder %s13, 2
      %s141 = scalar_select %p140, %s13, 2
      %s142 = smul.addr %s141, 8
      %s143 = scalar_lea.vmem %s2, %s142
      %p144 = scmp.lt.s32.totalorder %s13, 2
      %s145 = scalar_select %p144, %s13, 2
      %s146 = smul.addr %s145, 8
      %s147 = scalar_lea.vmem %s0, %s146
      %p148 = scmp.lt.s32.totalorder %s13, 2
      %s149 = scalar_select %p148, %s13, 2
      %s150 = smul.addr %s149, 8
      %s151 = scalar_lea.vmem %s1, %s150
      %p152 = scmp.lt.s32.totalorder %s13, 2
      %s153 = scalar_select %p152, %s13, 2
      %s154 = smul.addr %s153, 8
      %s155 = scalar_lea.vmem %s2, %s154
      %v156 = vld [vmem:[%s151] sm:$0xff]
      %v157 = vld [vmem:[%s147] sm:$0xff]
      %v158 = vlaneseq
      %v159 = vand.u32 %v158, 127
      %160 = vset.pattern.permute.xlu0 0
      %161 = vperm.xlu0 %160, %v157
      %v162 = vpop.permute.xlu0 %161
      %vm163 = vcmp.eq.s32.totalorder %v159, %v162
      %vm164 = vcmask 261120
      %v165 = vsel %vm164, %v156, -inf
      %166 = vmax.xlane.f32.xlu0 %v165
      %v167 = vpop.xlane.xlu0 %166
      %v168 = vsub.f32 %v156, %v167
      %v169 = vmul.f32 %v168, 1.442695
      %v170 = vpow.pop %v169
      %v171 = vsel %vm164, %v170, 0.0
      %172 = vadd.xlane.f32.xlu0 %v171
      %v173 = vpop.xlane.xlu0 %172
      %v174 = vlog2.pop %v173
      %v175 = vmul.f32 %v174, 0.6931472
      %v176 = vadd.f32 %v175, %v167
      %v177 = vsel %vm163, %v156, 0.0
      %v178 = vsel %vm164, %v177, 0.0
      %179 = vadd.xlane.f32.xlu0 %v178
      %v180 = vpop.xlane.xlu0 %179
      %v181 = vsub.f32 %v176, %v180
      %v182 = vsub.f32 %v180, %v176
      %v183 = vmul.f32 %v182, 1.442695
      %v184 = vpow.pop %v183
      %v185 = vsub.f32 1.0, %v184
      %v186 = vmul.f32 %v185, %v185
      %v187 = vmul.f32 %v186, %v181
      %s188 = smul.u32 %s13, 8
      %v189 = vlaneseq
      %v190 = vshrl.u32 %v189, 7
      %v191 = vstv %s188
      %v192 = vadd.s32 %v191, %v190
      %vm193 = vcmp.lt.s32.totalorder %v192, 20
      %v194 = vsel %vm193, %v187, 0.0
      %vm195 = vcmask 7168
      %v196 = vsel %vm195, %v194, 0.0
      %197 = vadd.xlane.f32.xlu0 %v196
      %v198 = vpop.xlane.xlu0 %197
      %v199 = vrot.slane %v198, 4
      %v200 = vadd.f32 %v198, %v199
      %v201 = vrot.slane %v200, 2
      %v202 = vadd.f32 %v200, %v201
      %v203 = vrot.slane %v202, 1
      %v204 = vadd.f32 %v202, %v203
      %s205 = vtos %v204
      %vm206 = vcmp.eq.s32.totalorder %v190, 0
      %v207 = vstv %s205
      %v208 = vsel %vm206, %v207, 0.0
      %209 = vst.msk [vmem:[%s155] sm:$0xff] %vm195, %v208
      %p210 = scmp.lt.s32.totalorder %s13, 2
      %s211 = scalar_select %p210, %s13, 2
      %s212 = smul.addr %s211, 8
      %s213 = scalar_lea.vmem %s2, %s212
      // Predicated region
      $region29: #{tpu_custom_call.1} parent=27 // pred_check
        %p214 = pneg %p83
      $region30: #{tpu_custom_call.1} parent=27 // pred_check_branch
        %216 = sbr.rel (%p214) target = $region32
      $region31: #{tpu_custom_call.1} parent=27 // pred_region
        _
      $region32: #{tpu_custom_call.1} parent=27 // pred_fallthru
        _
    $region28: #{tpu_custom_call.1} parent=5 // pred_fallthru
      _
    %p217 = scmp.le.s32.totalorder 2, %s8
    // Predicated region
    $region33: #{tpu_custom_call.1} parent=5 // pred_check
      %p218 = pneg %p217
    $region34: #{tpu_custom_call.1} parent=5 // pred_check_branch
      %220 = sbr.rel (%p218) target = $region36
    $region35: #{tpu_custom_call.1} parent=5 // pred_region
      %s221 = ssub.s32 %s8, 2
      // Predicated region
      $region37: #{tpu_custom_call.1} parent=35 // pred_check
        %p222 = pneg %p89
      $region38: #{tpu_custom_call.1} parent=35 // pred_check_branch
        %224 = sbr.rel (%p222) target = $region40
      $region39: #{tpu_custom_call.1} parent=35 // pred_region
        %p225 = scmp.lt.s32.totalorder %s14, 2
        %s226 = scalar_select %p225, %s14, 2
        %s227 = smul.addr %s226, 8
        %s228 = scalar_lea.vmem %s2, %s227
      $region40: #{tpu_custom_call.1} parent=35 // pred_fallthru
        _
    $region36: #{tpu_custom_call.1} parent=5 // pred_fallthru
      _
  $region6: #{tpu_custom_call.1} parent=0 // loop_footer
    %s12 = sadd.s32 1, %s8
  $region7: #{tpu_custom_call.1} parent=0 // loop_footer_branch
    %7 = sbr.rel target = $region3
  $region8: #{tpu_custom_call.1} parent=0 // loop_exit
    _

</llo_original>
